<compile_context>
chip_gen: v7x
topology: tpu7x:2x2x1
jax: 0.10.0
libtpu: 0.0.40
codegen_flags: <defaults>
</compile_context>

<pallas_src>
import jax
import jax.numpy as jnp
from jax import lax
from jax.experimental import pallas as pl
from jax.experimental.pallas import tpu as pltpu

NUM_CROSS_LAYERS = 3
LN_EPS = 1e-5  # torch.nn.LayerNorm default


def eccn_kernel(xt_ref, wt_ref, b_ref, gb_ref, dfc_ref, dfcb_ref, out_ref):
    x = xt_ref[...]                              # [D, BT] f32 (features on sublanes, batch on lanes)
    num_layers, dh, _ = wt_ref.shape
    inv_dh = 1.0 / dh

    for i in range(num_layers):                  # static, unrolled (L = 3)
        # H^T = w[i]^T @ x : single K=D matmul, bf16 MXU operands, f32 accumulation.
        H = jnp.dot(wt_ref[i], x.astype(jnp.bfloat16),
                    preferred_element_type=jnp.float32)          # [Dh, BT] f32

        # Two-pass LayerNorm over the feature (sublane) axis; stats are [1, BT].
        mean = jnp.sum(H, axis=0, keepdims=True) * inv_dh
        cent = H - mean
        var = jnp.sum(cent * cent, axis=0, keepdims=True) * inv_dh
        norm_H = cent * lax.rsqrt(var + LN_EPS)
        norm_H = norm_H * gb_ref[i, :dh] + gb_ref[i, dh:]        # gamma / beta, [Dh, 1]
        mask = jnp.maximum(norm_H, 0.0)                          # ReLU masker

        # x = x * (cat([H, H*mask], feature axis) + b) + x ; the concat is a sublane
        # stack at a vreg boundary (Dh = 16 f32 rows), essentially free.
        h_full = jnp.concatenate([H, H * mask], axis=0)          # [D, BT]
        x = x * (h_full + b_ref[i]) + x
        # TODO(synk): nn.Dropout(0.1) is identity in eval mode; training dropout omitted.

    # dfc head: lane-dense [1, BT] logit row via elementwise mul + sublane reduce.
    out_ref[...] = jnp.sum(dfc_ref[...] * x, axis=0, keepdims=True) + dfcb_ref[0, 0]


def exponential_cross_network(x, w, b, gamma, beta, dfc_w, dfc_b, *, b_tile=None):
    B, D = x.shape
    L, _, Dh = w.shape
    assert D == 2 * Dh

    if b_tile is None:
        # Lane-dense tiles; keep >=2 grid steps when possible (v7x has 2 TensorCores).
        b_tile = 512
        while b_tile > 128 and B <= b_tile:
            b_tile //= 2
    assert b_tile % 128 == 0
    n_tiles = pl.cdiv(B, b_tile)
    B_pad = n_tiles * b_tile

    # Batch-on-lanes activation layout; pad ragged batch with zero columns (harmless:
    # every op is per-column and the padded logits are sliced off below).
    xT = jnp.transpose(x)                                        # [D, B]
    if B_pad != B:
        xT = jnp.pad(xT, ((0, 0), (0, B_pad - B)))

    # Pre-transposed bf16 MXU weights and packed per-layer column-vector params.
    wT = jnp.transpose(w, (0, 2, 1)).astype(jnp.bfloat16)        # [L, Dh, D]
    b_col = b.reshape(L, D, 1).astype(jnp.float32)               # [L, D, 1]
    gb_col = jnp.concatenate([gamma, beta], axis=-1).reshape(L, D, 1).astype(jnp.float32)
    dfc_col = dfc_w.reshape(D, 1).astype(jnp.float32)            # [D, 1] (head stays on VPU, f32)
    dfc_b2 = dfc_b.reshape(1, 1).astype(jnp.float32)

    x_spec = pl.BlockSpec((D, b_tile), lambda i: (0, i))
    w_spec = pl.BlockSpec((L, Dh, D), lambda i: (0, 0, 0))       # VMEM-resident across steps
    p_spec = pl.BlockSpec((L, D, 1), lambda i: (0, 0, 0))
    d_spec = pl.BlockSpec((D, 1), lambda i: (0, 0))
    smem_spec = pl.BlockSpec(memory_space=pltpu.MemorySpace.SMEM)
    out_spec = pl.BlockSpec((1, b_tile), lambda i: (0, i))       # lane-dense logit row

    flops = B_pad * (L * (2 * D * Dh + 12 * Dh + 4 * D) + 3 * D)
    bytes_accessed = (B_pad * D * 4 + B_pad * 4 + wT.size * 2
                      + (b_col.size + gb_col.size + dfc_col.size + 1) * 4)

    out = pl.pallas_call(
        eccn_kernel,
        out_shape=jax.ShapeDtypeStruct((1, B_pad), jnp.float32),
        grid=(n_tiles,),
        in_specs=[x_spec, w_spec, p_spec, p_spec, d_spec, smem_spec],
        out_specs=out_spec,
        compiler_params=pltpu.CompilerParams(
            dimension_semantics=("parallel",),
            vmem_limit_bytes=4 * 1024 * 1024),
        cost_estimate=pl.CostEstimate(
            flops=int(flops), transcendentals=int(B_pad * L),
            bytes_accessed=int(bytes_accessed)),
    )(xT, wT, b_col, gb_col, dfc_col, dfc_b2)

    return out[0, :B].reshape(B, 1)


def reference_forward(x, w, b, gamma, beta, dfc_w, dfc_b):
    """Pure-JAX reference mirroring the PyTorch forward (eval mode).

    Cross-layer matmul operands are cast to bf16 (f32 accumulation) to mirror the
    kernel's MXU numeric path; LayerNorm is the two-pass form and the dfc head is f32,
    exactly as in the kernel.  All other math follows the torch module.
    """
    for i in range(w.shape[0]):
        H = jnp.dot(x.astype(jnp.bfloat16), w[i].astype(jnp.bfloat16),
                    preferred_element_type=jnp.float32)
        mean = jnp.mean(H, axis=-1, keepdims=True)
        var = jnp.mean((H - mean) ** 2, axis=-1, keepdims=True)
        norm_H = (H - mean) / jnp.sqrt(var + LN_EPS) * gamma[i] + beta[i]
        mask = jnp.maximum(norm_H, 0.0)
        H_full = jnp.concatenate([H, H * mask], axis=-1)
        x = x * (H_full + b[i]) + x
    return jnp.dot(x, dfc_w) + dfc_b.reshape(1, 1)


if __name__ == "__main__":
    B, D = 256, 32
    Dh = D // 2
    L = NUM_CROSS_LAYERS

    key = jax.random.PRNGKey(0)
    kx, kw, kb, kdw, kdb = jax.random.split(key, 5)

    x = jax.random.normal(kx, (B, D), dtype=jnp.float32)

    # nn.Linear(D, D//2, bias=False): weight ~ U(-1/sqrt(D), 1/sqrt(D)); stored transposed.
    bound = 1.0 / (D ** 0.5)
    w = jax.random.uniform(kw, (L, D, Dh), minval=-bound, maxval=bound, dtype=jnp.float32)
    # self.b[i] initialized with nn.init.uniform_ -> U(0, 1)
    b = jax.random.uniform(kb, (L, D), minval=0.0, maxval=1.0, dtype=jnp.float32)
    # LayerNorm default affine init
    gamma = jnp.ones((L, Dh), dtype=jnp.float32)
    beta = jnp.zeros((L, Dh), dtype=jnp.float32)
    # dfc = nn.Linear(D, 1): weight/bias ~ U(-1/sqrt(D), 1/sqrt(D)); stored transposed.
    dfc_w = jax.random.uniform(kdw, (D, 1), minval=-bound, maxval=bound, dtype=jnp.float32)
    dfc_b = jax.random.uniform(kdb, (1, 1), minval=-bound, maxval=bound, dtype=jnp.float32)

    logit = exponential_cross_network(x, w, b, gamma, beta, dfc_w, dfc_b)
    logit = jax.block_until_ready(logit)

    ref = reference_forward(x, w, b, gamma, beta, dfc_w, dfc_b)
    assert logit.shape == (B, 1)
    max_err = float(jnp.max(jnp.abs(logit - ref)))
    assert jnp.allclose(logit, ref, atol=5e-3, rtol=5e-3), f"mismatch vs ref, max_err={max_err}"

    print("KERNEL_OK")
</pallas_src>

<mosaic_0001>
module attributes {stable_mosaic.version = 11 : i64} {
  func.func @eccn_kernel(%arg0: i32, %arg1: memref<32x128xf32, #tpu.memory_space<vmem>>, %arg2: memref<3x16x32xbf16, #tpu.memory_space<vmem>>, %arg3: memref<3x32x1xf32, #tpu.memory_space<vmem>>, %arg4: memref<3x32x1xf32, #tpu.memory_space<vmem>>, %arg5: memref<32x1xf32, #tpu.memory_space<vmem>>, %arg6: memref<1x1xf32, #tpu.memory_space<smem>>, %arg7: memref<1x128xf32, #tpu.memory_space<vmem>>) attributes {dimension_semantics = [#tpu.dimension_semantics<parallel>], iteration_bounds = array<i64: 2>, scalar_prefetch = 0 : i64, scratch_operands = 0 : i64, tpu.core_type = #tpu.core_type<tc>, window_params = [{transform_indices = @transform_0, window_bounds = array<i64: 32, 128>}, {pipeline_mode = #tpu.pipeline_mode<synchronous>, transform_indices = @transform_1, window_bounds = array<i64: 3, 16, 32>}, {pipeline_mode = #tpu.pipeline_mode<synchronous>, transform_indices = @transform_2, window_bounds = array<i64: 3, 32, 1>}, {pipeline_mode = #tpu.pipeline_mode<synchronous>, transform_indices = @transform_3, window_bounds = array<i64: 3, 32, 1>}, {pipeline_mode = #tpu.pipeline_mode<synchronous>, transform_indices = @transform_4, window_bounds = array<i64: 32, 1>}, {transform_indices = @transform_5, window_bounds = array<i64: 1, 1>}, {transform_indices = @transform_6, window_bounds = array<i64: 1, 128>}]} {
    %c0 = arith.constant 0 : index
    %c0_0 = arith.constant 0 : index
    %0 = vector.load %arg1[%c0, %c0_0] : memref<32x128xf32, #tpu.memory_space<vmem>>, vector<32x128xf32>
    %c0_1 = arith.constant 0 : index
    %c0_2 = arith.constant 0 : index
    %c0_3 = arith.constant 0 : index
    %1 = vector.load %arg2[%c0_1, %c0_2, %c0_3] : memref<3x16x32xbf16, #tpu.memory_space<vmem>>, vector<1x16x32xbf16>
    %2 = vector.shape_cast %1 : vector<1x16x32xbf16> to vector<16x32xbf16>
    %3 = arith.truncf %0 : vector<32x128xf32> to vector<32x128xbf16>
    %cst = arith.constant dense<0.000000e+00> : vector<16x128xf32>
    %4 = tpu.matmul %2, %3, %cst {dimension_numbers = #tpu.dot_dimension_numbers<[1], [0], [0], [1], [0, 0, 1, 1], [], []>} : vector<16x32xbf16>, vector<32x128xbf16>, vector<16x128xf32> -> vector<16x128xf32>
    %cst_4 = arith.constant dense<0.000000e+00> : vector<128xf32>
    %5 = vector.multi_reduction <add>, %4, %cst_4 [0] : vector<16x128xf32> to vector<128xf32>
    %6 = vector.shape_cast %5 : vector<128xf32> to vector<1x128xf32>
    %cst_5 = arith.constant 6.250000e-02 : f32
    %7 = vector.broadcast %cst_5 : f32 to vector<1x128xf32>
    %8 = arith.mulf %6, %7 : vector<1x128xf32>
    %9 = vector.broadcast %8 : vector<1x128xf32> to vector<16x128xf32>
    %10 = arith.subf %4, %9 : vector<16x128xf32>
    %11 = arith.mulf %10, %10 : vector<16x128xf32>
    %cst_6 = arith.constant dense<0.000000e+00> : vector<128xf32>
    %12 = vector.multi_reduction <add>, %11, %cst_6 [0] : vector<16x128xf32> to vector<128xf32>
    %13 = vector.shape_cast %12 : vector<128xf32> to vector<1x128xf32>
    %cst_7 = arith.constant 6.250000e-02 : f32
    %14 = vector.broadcast %cst_7 : f32 to vector<1x128xf32>
    %15 = arith.mulf %13, %14 : vector<1x128xf32>
    %cst_8 = arith.constant 9.99999974E-6 : f32
    %16 = vector.broadcast %cst_8 : f32 to vector<1x128xf32>
    %17 = arith.addf %15, %16 : vector<1x128xf32>
    %18 = math.rsqrt %17 : vector<1x128xf32>
    %19 = vector.broadcast %18 : vector<1x128xf32> to vector<16x128xf32>
    %20 = arith.mulf %10, %19 : vector<16x128xf32>
    %c0_9 = arith.constant 0 : index
    %c0_10 = arith.constant 0 : index
    %c0_11 = arith.constant 0 : index
    %21 = vector.load %arg4[%c0_9, %c0_10, %c0_11] : memref<3x32x1xf32, #tpu.memory_space<vmem>>, vector<1x16x1xf32>
    %22 = vector.shape_cast %21 : vector<1x16x1xf32> to vector<16x1xf32>
    %23 = vector.broadcast %22 : vector<16x1xf32> to vector<16x128xf32>
    %24 = arith.mulf %20, %23 : vector<16x128xf32>
    %c0_12 = arith.constant 0 : index
    %c16 = arith.constant 16 : index
    %c0_13 = arith.constant 0 : index
    %25 = vector.load %arg4[%c0_12, %c16, %c0_13] : memref<3x32x1xf32, #tpu.memory_space<vmem>>, vector<1x16x1xf32>
    %26 = vector.shape_cast %25 : vector<1x16x1xf32> to vector<16x1xf32>
    %27 = vector.broadcast %26 : vector<16x1xf32> to vector<16x128xf32>
    %28 = arith.addf %24, %27 : vector<16x128xf32>
    %cst_14 = arith.constant 0.000000e+00 : f32
    %29 = vector.broadcast %cst_14 : f32 to vector<16x128xf32>
    %30 = arith.maximumf %28, %29 : vector<16x128xf32>
    %31 = arith.mulf %4, %30 : vector<16x128xf32>
    %32 = tpu.concatenate %4, %31 in 0 : vector<16x128xf32>, vector<16x128xf32> -> vector<32x128xf32>
    %c0_15 = arith.constant 0 : index
    %c0_16 = arith.constant 0 : index
    %c0_17 = arith.constant 0 : index
    %33 = vector.load %arg3[%c0_15, %c0_16, %c0_17] : memref<3x32x1xf32, #tpu.memory_space<vmem>>, vector<1x32x1xf32>
    %34 = vector.shape_cast %33 : vector<1x32x1xf32> to vector<32x1xf32>
    %35 = vector.broadcast %34 : vector<32x1xf32> to vector<32x128xf32>
    %36 = arith.addf %32, %35 : vector<32x128xf32>
    %37 = arith.mulf %0, %36 : vector<32x128xf32>
    %38 = arith.addf %37, %0 : vector<32x128xf32>
    %c1 = arith.constant 1 : index
    %c0_18 = arith.constant 0 : index
    %c0_19 = arith.constant 0 : index
    %39 = vector.load %arg2[%c1, %c0_18, %c0_19] : memref<3x16x32xbf16, #tpu.memory_space<vmem>>, vector<1x16x32xbf16>
    %40 = vector.shape_cast %39 : vector<1x16x32xbf16> to vector<16x32xbf16>
    %41 = arith.truncf %38 : vector<32x128xf32> to vector<32x128xbf16>
    %cst_20 = arith.constant dense<0.000000e+00> : vector<16x128xf32>
    %42 = tpu.matmul %40, %41, %cst_20 {dimension_numbers = #tpu.dot_dimension_numbers<[1], [0], [0], [1], [0, 0, 1, 1], [], []>} : vector<16x32xbf16>, vector<32x128xbf16>, vector<16x128xf32> -> vector<16x128xf32>
    %cst_21 = arith.constant dense<0.000000e+00> : vector<128xf32>
    %43 = vector.multi_reduction <add>, %42, %cst_21 [0] : vector<16x128xf32> to vector<128xf32>
    %44 = vector.shape_cast %43 : vector<128xf32> to vector<1x128xf32>
    %cst_22 = arith.constant 6.250000e-02 : f32
    %45 = vector.broadcast %cst_22 : f32 to vector<1x128xf32>
    %46 = arith.mulf %44, %45 : vector<1x128xf32>
    %47 = vector.broadcast %46 : vector<1x128xf32> to vector<16x128xf32>
    %48 = arith.subf %42, %47 : vector<16x128xf32>
    %49 = arith.mulf %48, %48 : vector<16x128xf32>
    %cst_23 = arith.constant dense<0.000000e+00> : vector<128xf32>
    %50 = vector.multi_reduction <add>, %49, %cst_23 [0] : vector<16x128xf32> to vector<128xf32>
    %51 = vector.shape_cast %50 : vector<128xf32> to vector<1x128xf32>
    %cst_24 = arith.constant 6.250000e-02 : f32
    %52 = vector.broadcast %cst_24 : f32 to vector<1x128xf32>
    %53 = arith.mulf %51, %52 : vector<1x128xf32>
    %cst_25 = arith.constant 9.99999974E-6 : f32
    %54 = vector.broadcast %cst_25 : f32 to vector<1x128xf32>
    %55 = arith.addf %53, %54 : vector<1x128xf32>
    %56 = math.rsqrt %55 : vector<1x128xf32>
    %57 = vector.broadcast %56 : vector<1x128xf32> to vector<16x128xf32>
    %58 = arith.mulf %48, %57 : vector<16x128xf32>
    %c1_26 = arith.constant 1 : index
    %c0_27 = arith.constant 0 : index
    %c0_28 = arith.constant 0 : index
    %59 = vector.load %arg4[%c1_26, %c0_27, %c0_28] : memref<3x32x1xf32, #tpu.memory_space<vmem>>, vector<1x16x1xf32>
    %60 = vector.shape_cast %59 : vector<1x16x1xf32> to vector<16x1xf32>
    %61 = vector.broadcast %60 : vector<16x1xf32> to vector<16x128xf32>
    %62 = arith.mulf %58, %61 : vector<16x128xf32>
    %c1_29 = arith.constant 1 : index
    %c16_30 = arith.constant 16 : index
    %c0_31 = arith.constant 0 : index
    %63 = vector.load %arg4[%c1_29, %c16_30, %c0_31] : memref<3x32x1xf32, #tpu.memory_space<vmem>>, vector<1x16x1xf32>
    %64 = vector.shape_cast %63 : vector<1x16x1xf32> to vector<16x1xf32>
    %65 = vector.broadcast %64 : vector<16x1xf32> to vector<16x128xf32>
    %66 = arith.addf %62, %65 : vector<16x128xf32>
    %cst_32 = arith.constant 0.000000e+00 : f32
    %67 = vector.broadcast %cst_32 : f32 to vector<16x128xf32>
    %68 = arith.maximumf %66, %67 : vector<16x128xf32>
    %69 = arith.mulf %42, %68 : vector<16x128xf32>
    %70 = tpu.concatenate %42, %69 in 0 : vector<16x128xf32>, vector<16x128xf32> -> vector<32x128xf32>
    %c1_33 = arith.constant 1 : index
    %c0_34 = arith.constant 0 : index
    %c0_35 = arith.constant 0 : index
    %71 = vector.load %arg3[%c1_33, %c0_34, %c0_35] : memref<3x32x1xf32, #tpu.memory_space<vmem>>, vector<1x32x1xf32>
    %72 = vector.shape_cast %71 : vector<1x32x1xf32> to vector<32x1xf32>
    %73 = vector.broadcast %72 : vector<32x1xf32> to vector<32x128xf32>
    %74 = arith.addf %70, %73 : vector<32x128xf32>
    %75 = arith.mulf %38, %74 : vector<32x128xf32>
    %76 = arith.addf %75, %38 : vector<32x128xf32>
    %c2 = arith.constant 2 : index
    %c0_36 = arith.constant 0 : index
    %c0_37 = arith.constant 0 : index
    %77 = vector.load %arg2[%c2, %c0_36, %c0_37] : memref<3x16x32xbf16, #tpu.memory_space<vmem>>, vector<1x16x32xbf16>
    %78 = vector.shape_cast %77 : vector<1x16x32xbf16> to vector<16x32xbf16>
    %79 = arith.truncf %76 : vector<32x128xf32> to vector<32x128xbf16>
    %cst_38 = arith.constant dense<0.000000e+00> : vector<16x128xf32>
    %80 = tpu.matmul %78, %79, %cst_38 {dimension_numbers = #tpu.dot_dimension_numbers<[1], [0], [0], [1], [0, 0, 1, 1], [], []>} : vector<16x32xbf16>, vector<32x128xbf16>, vector<16x128xf32> -> vector<16x128xf32>
    %cst_39 = arith.constant dense<0.000000e+00> : vector<128xf32>
    %81 = vector.multi_reduction <add>, %80, %cst_39 [0] : vector<16x128xf32> to vector<128xf32>
    %82 = vector.shape_cast %81 : vector<128xf32> to vector<1x128xf32>
    %cst_40 = arith.constant 6.250000e-02 : f32
    %83 = vector.broadcast %cst_40 : f32 to vector<1x128xf32>
    %84 = arith.mulf %82, %83 : vector<1x128xf32>
    %85 = vector.broadcast %84 : vector<1x128xf32> to vector<16x128xf32>
    %86 = arith.subf %80, %85 : vector<16x128xf32>
    %87 = arith.mulf %86, %86 : vector<16x128xf32>
    %cst_41 = arith.constant dense<0.000000e+00> : vector<128xf32>
    %88 = vector.multi_reduction <add>, %87, %cst_41 [0] : vector<16x128xf32> to vector<128xf32>
    %89 = vector.shape_cast %88 : vector<128xf32> to vector<1x128xf32>
    %cst_42 = arith.constant 6.250000e-02 : f32
    %90 = vector.broadcast %cst_42 : f32 to vector<1x128xf32>
    %91 = arith.mulf %89, %90 : vector<1x128xf32>
    %cst_43 = arith.constant 9.99999974E-6 : f32
    %92 = vector.broadcast %cst_43 : f32 to vector<1x128xf32>
    %93 = arith.addf %91, %92 : vector<1x128xf32>
    %94 = math.rsqrt %93 : vector<1x128xf32>
    %95 = vector.broadcast %94 : vector<1x128xf32> to vector<16x128xf32>
    %96 = arith.mulf %86, %95 : vector<16x128xf32>
    %c2_44 = arith.constant 2 : index
    %c0_45 = arith.constant 0 : index
    %c0_46 = arith.constant 0 : index
    %97 = vector.load %arg4[%c2_44, %c0_45, %c0_46] : memref<3x32x1xf32, #tpu.memory_space<vmem>>, vector<1x16x1xf32>
    %98 = vector.shape_cast %97 : vector<1x16x1xf32> to vector<16x1xf32>
    %99 = vector.broadcast %98 : vector<16x1xf32> to vector<16x128xf32>
    %100 = arith.mulf %96, %99 : vector<16x128xf32>
    %c2_47 = arith.constant 2 : index
    %c16_48 = arith.constant 16 : index
    %c0_49 = arith.constant 0 : index
    %101 = vector.load %arg4[%c2_47, %c16_48, %c0_49] : memref<3x32x1xf32, #tpu.memory_space<vmem>>, vector<1x16x1xf32>
    %102 = vector.shape_cast %101 : vector<1x16x1xf32> to vector<16x1xf32>
    %103 = vector.broadcast %102 : vector<16x1xf32> to vector<16x128xf32>
    %104 = arith.addf %100, %103 : vector<16x128xf32>
    %cst_50 = arith.constant 0.000000e+00 : f32
    %105 = vector.broadcast %cst_50 : f32 to vector<16x128xf32>
    %106 = arith.maximumf %104, %105 : vector<16x128xf32>
    %107 = arith.mulf %80, %106 : vector<16x128xf32>
    %108 = tpu.concatenate %80, %107 in 0 : vector<16x128xf32>, vector<16x128xf32> -> vector<32x128xf32>
    %c2_51 = arith.constant 2 : index
    %c0_52 = arith.constant 0 : index
    %c0_53 = arith.constant 0 : index
    %109 = vector.load %arg3[%c2_51, %c0_52, %c0_53] : memref<3x32x1xf32, #tpu.memory_space<vmem>>, vector<1x32x1xf32>
    %110 = vector.shape_cast %109 : vector<1x32x1xf32> to vector<32x1xf32>
    %111 = vector.broadcast %110 : vector<32x1xf32> to vector<32x128xf32>
    %112 = arith.addf %108, %111 : vector<32x128xf32>
    %113 = arith.mulf %76, %112 : vector<32x128xf32>
    %114 = arith.addf %113, %76 : vector<32x128xf32>
    %c0_54 = arith.constant 0 : index
    %c0_55 = arith.constant 0 : index
    %115 = vector.load %arg5[%c0_54, %c0_55] : memref<32x1xf32, #tpu.memory_space<vmem>>, vector<32x1xf32>
    %116 = vector.broadcast %115 : vector<32x1xf32> to vector<32x128xf32>
    %117 = arith.mulf %116, %114 : vector<32x128xf32>
    %cst_56 = arith.constant dense<0.000000e+00> : vector<128xf32>
    %118 = vector.multi_reduction <add>, %117, %cst_56 [0] : vector<32x128xf32> to vector<128xf32>
    %119 = vector.shape_cast %118 : vector<128xf32> to vector<1x128xf32>
    %c0_57 = arith.constant 0 : index
    %c0_58 = arith.constant 0 : index
    %120 = memref.load %arg6[%c0_57, %c0_58] : memref<1x1xf32, #tpu.memory_space<smem>>
    %121 = vector.broadcast %120 : f32 to vector<1x128xf32>
    %122 = arith.addf %119, %121 : vector<1x128xf32>
    %c0_59 = arith.constant 0 : index
    %c0_60 = arith.constant 0 : index
    %123 = vector.load %arg7[%c0_59, %c0_60] : memref<1x128xf32, #tpu.memory_space<vmem>>, vector<1x128xf32>
    tpu.vector_store %arg7[%c0_59, %c0_60], %122 {strides = array<i32>} : memref<1x128xf32, #tpu.memory_space<vmem>>, vector<1x128xf32>,
    return
  }
  func.func @transform_0(%arg0: i32) -> (i32, i32) {
    %c0_i32 = arith.constant 0 : i32
    %c0_i32_0 = arith.constant 0 : i32
    return %c0_i32, %arg0 : i32, i32
  }
  func.func @transform_1(%arg0: i32) -> (i32, i32, i32) {
    %c0_i32 = arith.constant 0 : i32
    %c0_i32_0 = arith.constant 0 : i32
    %c0_i32_1 = arith.constant 0 : i32
    %c0_i32_2 = arith.constant 0 : i32
    return %c0_i32, %c0_i32_0, %c0_i32_1 : i32, i32, i32
  }
  func.func @transform_2(%arg0: i32) -> (i32, i32, i32) {
    %c0_i32 = arith.constant 0 : i32
    %c0_i32_0 = arith.constant 0 : i32
    %c0_i32_1 = arith.constant 0 : i32
    %c0_i32_2 = arith.constant 0 : i32
    return %c0_i32, %c0_i32_0, %c0_i32_1 : i32, i32, i32
  }
  func.func @transform_3(%arg0: i32) -> (i32, i32, i32) {
    %c0_i32 = arith.constant 0 : i32
    %c0_i32_0 = arith.constant 0 : i32
    %c0_i32_1 = arith.constant 0 : i32
    %c0_i32_2 = arith.constant 0 : i32
    return %c0_i32, %c0_i32_0, %c0_i32_1 : i32, i32, i32
  }
  func.func @transform_4(%arg0: i32) -> (i32, i32) {
    %c0_i32 = arith.constant 0 : i32
    %c0_i32_0 = arith.constant 0 : i32
    %c0_i32_1 = arith.constant 0 : i32
    return %c0_i32, %c0_i32_0 : i32, i32
  }
  func.func @transform_5(%arg0: i32) -> (i32, i32) {
    %c0_i32 = arith.constant 0 : i32
    %c0_i32_0 = arith.constant 0 : i32
    %c0_i32_1 = arith.constant 0 : i32
    return %c0_i32, %c0_i32_0 : i32, i32
  }
  func.func @transform_6(%arg0: i32) -> (i32, i32) {
    %c0_i32 = arith.constant 0 : i32
    %c0_i32_0 = arith.constant 0 : i32
    return %c0_i32, %arg0 : i32, i32
  }
}

</mosaic_0001>

<llo_original>
// kernel: tpu_custom_call.1
$region0: #{tpu_custom_call.1}
  #allocation0 [shape = 'u32[]', space=smem, size = 0x4, offset = 0x4, fixed_abs, tag = 'smem constant byte address 0x4 - core index']
  #allocation1 [shape = 'u32[144,128]{1,0:T(1,128)}', space=vmem, size = 0x12000, scoped, tag = 'internal scratch']
  #allocation2 [shape = 'f32[1,1]{1,0:T(1,128)S(6)}', space=smem, size = 0x200, scoped, tag = 'scoped memory for tpu_custom_call.1']
  %s0 = inlined_call_operand.vmem [shape: f32[32,256], index: 0, kind: input, shape index: {}]
  %s1 = inlined_call_operand.vmem [shape: bf16[3,16,32], index: 1, kind: input, shape index: {}]
  %s2 = inlined_call_operand.vmem [shape: f32[3,32,1], index: 2, kind: input, shape index: {}]
  %s3 = inlined_call_operand.vmem [shape: f32[3,32,1], index: 3, kind: input, shape index: {}]
  %s4 = inlined_call_operand.vmem [shape: f32[32,1], index: 4, kind: input, shape index: {}]
  %s5 = inlined_call_operand.<no memory space> [shape: f32[1,1], index: 5, kind: input, shape index: {}]
  %s6 = inlined_call_operand.hbm [shape: f32[1,256], index: 6, kind: output, shape index: {}]
  %s7 = sld [smem:[#allocation0]]
  $region95: #{tpu_custom_call.1} parent=0
    _
  %s9 = ssub.s32 1, %s7
  %s10 = scalar_select 0, %s9, %s7
  %11 = sst [smem:[#allocation2]] %s5
  $region1: #{tpu_custom_call.1} parent=0
    #allocation3 [shape = 'u8[32768]{0}', space=vmem, size = 0x8000, scoped, tag = 'input window, operand 0']
    #allocation4 [shape = 'u8[1024]{0}', space=vmem, size = 0x400, scoped, tag = 'output window, operand 0']
    #allocation5 [shape = 's32[2]{0}', space=sflag, size = 0x8, scoped, tag = 'scoped memory for tpu_custom_call.1']
    %12 = vsyncpa [#allocation5], 0
    %s13 = scalar_lea.sflag [#allocation5], 1
    %14 = vsyncpa %s13, 0
    loop: start=0, step=1, limit=4
    $region2: #{tpu_custom_call.1} parent=1 // loop_pre_header
      _
    $region3: #{tpu_custom_call.1} parent=1 // loop_header
      %s16 = sphi 0, %s20
      %p17 = scmp.ge.s32.totalorder %s16, 4
      %s26 = sphi 0, %s28
      %s29 = sphi 0, %s26
      %s30 = sphi 0, %s29
      %s46 = sphi 0, %s30
      %s50 = sphi 0, %s50
      %s52 = sphi 0, %s50
      %s53 = sphi 0, %s52
      %s67 = sphi 0, %s53
      %s71 = sphi 0, %s71
      %s73 = sphi 0, %s71
      %s74 = sphi 0, %s73
      %s88 = sphi 0, %s74
      %s92 = sphi 0, %s92
      %s94 = sphi 0, %s92
      %s95 = sphi 0, %s94
      %s109 = sphi 0, %s95
      %s113 = sphi 0, %s113
      %s115 = sphi 0, %s113
      %s116 = sphi 0, %s115
      %s130 = sphi 0, %s116
      %s134 = sphi 0, %s134
      %s136 = sphi 0, %s134
      %s137 = sphi 0, %s136
      %s151 = sphi 0, %s137
      %s157 = sphi 0, %s159
      %s160 = sphi 0, %s157
      %s161 = sphi 0, %s160
      %s177 = sphi 0, %s161
    $region4: #{tpu_custom_call.1} parent=1 // loop_header_branch
      %19 = sbr.rel (%p17) target = $region8
    $region5: #{tpu_custom_call.1} parent=1 // loop_body
      %s21 = ssub.s32 %s16, 1
      %s22 = ssub.s32 %s16, 2
      %s23 = sadd.s32 %s16, 1
      %s24 = ssub.s32 %s16, %s23
      %p25 = scmp.eq.s32.totalorder %s24, 0
      %s27 = sadd.s32 %s26, 1
      %s28 = scalar_select %p25, %s26, %s27
      %p31 = pneg %p25
      %p32 = scmp.eq.s32.totalorder %s16, 1
      %p33 = por %p31, %p32
      %p34 = scmp.ne.s32.totalorder %s26, %s29
      %p35 = scmp.eq.s32.totalorder %s16, 0
      %p36 = por %p34, %p35
      %p37 = scmp.ne.s32.totalorder %s26, %s29
      %p38 = scmp.eq.s32.totalorder %s21, 1
      %p39 = por %p37, %p38
      %p40 = scmp.ne.s32.totalorder %s29, %s30
      %p41 = scmp.eq.s32.totalorder %s21, 0
      %p42 = por %p40, %p41
      %p43 = scmp.ne.s32.totalorder %s29, %s30
      %p44 = scmp.eq.s32.totalorder %s22, 1
      %p45 = por %p43, %p44
      %p47 = scmp.ne.s32.totalorder %s30, %s46
      %p48 = scmp.eq.s32.totalorder %s22, 0
      %p49 = por %p47, %p48
      %s51 = sadd.s32 %s50, 1
      %p54 = scmp.eq.s32.totalorder %s16, 1
      %p55 = scmp.ne.s32.totalorder %s50, %s52
      %p56 = scmp.eq.s32.totalorder %s16, 0
      %p57 = por %p55, %p56
      %p58 = scmp.ne.s32.totalorder %s50, %s52
      %p59 = scmp.eq.s32.totalorder %s21, 1
      %p60 = por %p58, %p59
      %p61 = scmp.ne.s32.totalorder %s52, %s53
      %p62 = scmp.eq.s32.totalorder %s21, 0
      %p63 = por %p61, %p62
      %p64 = scmp.ne.s32.totalorder %s52, %s53
      %p65 = scmp.eq.s32.totalorder %s22, 1
      %p66 = por %p64, %p65
      %p68 = scmp.ne.s32.totalorder %s53, %s67
      %p69 = scmp.eq.s32.totalorder %s22, 0
      %p70 = por %p68, %p69
      %s72 = sadd.s32 %s71, 1
      %p75 = scmp.eq.s32.totalorder %s16, 1
      %p76 = scmp.ne.s32.totalorder %s71, %s73
      %p77 = scmp.eq.s32.totalorder %s16, 0
      %p78 = por %p76, %p77
      %p79 = scmp.ne.s32.totalorder %s71, %s73
      %p80 = scmp.eq.s32.totalorder %s21, 1
      %p81 = por %p79, %p80
      %p82 = scmp.ne.s32.totalorder %s73, %s74
      %p83 = scmp.eq.s32.totalorder %s21, 0
      %p84 = por %p82, %p83
      %p85 = scmp.ne.s32.totalorder %s73, %s74
      %p86 = scmp.eq.s32.totalorder %s22, 1
      %p87 = por %p85, %p86
      %p89 = scmp.ne.s32.totalorder %s74, %s88
      %p90 = scmp.eq.s32.totalorder %s22, 0
      %p91 = por %p89, %p90
      %s93 = sadd.s32 %s92, 1
      %p96 = scmp.eq.s32.totalorder %s16, 1
      %p97 = scmp.ne.s32.totalorder %s92, %s94
      %p98 = scmp.eq.s32.totalorder %s16, 0
      %p99 = por %p97, %p98
      %p100 = scmp.ne.s32.totalorder %s92, %s94
      %p101 = scmp.eq.s32.totalorder %s21, 1
      %p102 = por %p100, %p101
      %p103 = scmp.ne.s32.totalorder %s94, %s95
      %p104 = scmp.eq.s32.totalorder %s21, 0
      %p105 = por %p103, %p104
      %p106 = scmp.ne.s32.totalorder %s94, %s95
      %p107 = scmp.eq.s32.totalorder %s22, 1
      %p108 = por %p106, %p107
      %p110 = scmp.ne.s32.totalorder %s95, %s109
      %p111 = scmp.eq.s32.totalorder %s22, 0
      %p112 = por %p110, %p111
      %s114 = sadd.s32 %s113, 1
      %p117 = scmp.eq.s32.totalorder %s16, 1
      %p118 = scmp.ne.s32.totalorder %s113, %s115
      %p119 = scmp.eq.s32.totalorder %s16, 0
      %p120 = por %p118, %p119
      %p121 = scmp.ne.s32.totalorder %s113, %s115
      %p122 = scmp.eq.s32.totalorder %s21, 1
      %p123 = por %p121, %p122
      %p124 = scmp.ne.s32.totalorder %s115, %s116
      %p125 = scmp.eq.s32.totalorder %s21, 0
      %p126 = por %p124, %p125
      %p127 = scmp.ne.s32.totalorder %s115, %s116
      %p128 = scmp.eq.s32.totalorder %s22, 1
      %p129 = por %p127, %p128
      %p131 = scmp.ne.s32.totalorder %s116, %s130
      %p132 = scmp.eq.s32.totalorder %s22, 0
      %p133 = por %p131, %p132
      %s135 = sadd.s32 %s134, 1
      %p138 = scmp.eq.s32.totalorder %s16, 1
      %p139 = scmp.ne.s32.totalorder %s134, %s136
      %p140 = scmp.eq.s32.totalorder %s16, 0
      %p141 = por %p139, %p140
      %p142 = scmp.ne.s32.totalorder %s134, %s136
      %p143 = scmp.eq.s32.totalorder %s21, 1
      %p144 = por %p142, %p143
      %p145 = scmp.ne.s32.totalorder %s136, %s137
      %p146 = scmp.eq.s32.totalorder %s21, 0
      %p147 = por %p145, %p146
      %p148 = scmp.ne.s32.totalorder %s136, %s137
      %p149 = scmp.eq.s32.totalorder %s22, 1
      %p150 = por %p148, %p149
      %p152 = scmp.ne.s32.totalorder %s137, %s151
      %p153 = scmp.eq.s32.totalorder %s22, 0
      %p154 = por %p152, %p153
      %s155 = ssub.s32 %s16, %s23
      %p156 = scmp.eq.s32.totalorder %s155, 0
      %s158 = sadd.s32 %s157, 1
      %s159 = scalar_select %p156, %s157, %s158
      %p162 = pneg %p156
      %p163 = scmp.eq.s32.totalorder %s16, 1
      %p164 = por %p162, %p163
      %p165 = scmp.ne.s32.totalorder %s157, %s160
      %p166 = scmp.eq.s32.totalorder %s16, 0
      %p167 = por %p165, %p166
      %p168 = scmp.ne.s32.totalorder %s157, %s160
      %p169 = scmp.eq.s32.totalorder %s21, 1
      %p170 = por %p168, %p169
      %p171 = scmp.ne.s32.totalorder %s160, %s161
      %p172 = scmp.eq.s32.totalorder %s21, 0
      %p173 = por %p171, %p172
      %p174 = scmp.ne.s32.totalorder %s160, %s161
      %p175 = scmp.eq.s32.totalorder %s22, 1
      %p176 = por %p174, %p175
      %p178 = scmp.ne.s32.totalorder %s161, %s177
      %p179 = scmp.eq.s32.totalorder %s22, 0
      %p180 = por %p178, %p179
      %p181 = scmp.le.s32.totalorder 1, %s16
      %p182 = scmp.lt.s32.totalorder %s16, 3
      %p183 = pnand %p181, %p182
      %p184 = pneg %p183
      // Predicated region
      $region9: #{tpu_custom_call.1} parent=5 // pred_check
        _
      $region10: #{tpu_custom_call.1} parent=5 // pred_check_branch
        %186 = sbr.rel (%p183) target = $region12
      $region11: #{tpu_custom_call.1} parent=5 // pred_region
        %s187 = ssub.s32 %s16, 1
        // Predicated region
        $region13: #{tpu_custom_call.1} parent=11 // pred_check
          %p188 = pneg %p63
        $region14: #{tpu_custom_call.1} parent=11 // pred_check_branch
          %190 = sbr.rel (%p188) target = $region16
        $region15: #{tpu_custom_call.1} parent=11 // pred_region
          _
        $region16: #{tpu_custom_call.1} parent=11 // pred_fallthru
          _
        // Predicated region
        $region17: #{tpu_custom_call.1} parent=11 // pred_check
          %p191 = pneg %p84
        $region18: #{tpu_custom_call.1} parent=11 // pred_check_branch
          %193 = sbr.rel (%p191) target = $region20
        $region19: #{tpu_custom_call.1} parent=11 // pred_region
          _
        $region20: #{tpu_custom_call.1} parent=11 // pred_fallthru
          _
        // Predicated region
        $region21: #{tpu_custom_call.1} parent=11 // pred_check
          %p194 = pneg %p105
        $region22: #{tpu_custom_call.1} parent=11 // pred_check_branch
          %196 = sbr.rel (%p194) target = $region24
        $region23: #{tpu_custom_call.1} parent=11 // pred_region
          _
        $region24: #{tpu_custom_call.1} parent=11 // pred_fallthru
          _
        // Predicated region
        $region25: #{tpu_custom_call.1} parent=11 // pred_check
          %p197 = pneg %p126
        $region26: #{tpu_custom_call.1} parent=11 // pred_check_branch
          %199 = sbr.rel (%p197) target = $region28
        $region27: #{tpu_custom_call.1} parent=11 // pred_region
          _
        $region28: #{tpu_custom_call.1} parent=11 // pred_fallthru
          _
        // Predicated region
        $region29: #{tpu_custom_call.1} parent=11 // pred_check
          %p200 = pneg %p147
        $region30: #{tpu_custom_call.1} parent=11 // pred_check_branch
          %202 = sbr.rel (%p200) target = $region32
        $region31: #{tpu_custom_call.1} parent=11 // pred_region
          _
        $region32: #{tpu_custom_call.1} parent=11 // pred_fallthru
          _
      $region12: #{tpu_custom_call.1} parent=5 // pred_fallthru
        _
      %p203 = scmp.lt.s32.totalorder %s16, 2
      // Predicated region
      $region33: #{tpu_custom_call.1} parent=5 // pred_check
        %p204 = pneg %p203
      $region34: #{tpu_custom_call.1} parent=5 // pred_check_branch
        %206 = sbr.rel (%p204) target = $region36
      $region35: #{tpu_custom_call.1} parent=5 // pred_region
        // Predicated region
        $region37: #{tpu_custom_call.1} parent=35 // pred_check
          %p207 = pneg %p36
        $region38: #{tpu_custom_call.1} parent=35 // pred_check_branch
          %209 = sbr.rel (%p207) target = $region40
        $region39: #{tpu_custom_call.1} parent=35 // pred_region
          %s210 = sand.u32 %s26, 1
          %s211 = sand.u32 %s26, 1
          %s212 = smul.addr %s211, 32
          %s213 = scalar_lea.vmem [#allocation3], %s212
          %s214 = smul.addr %s16, 8
          %s215 = scalar_lea.vmem %s0, %s214
          // Predicated region
          $region41: #{tpu_custom_call.1} parent=39 // pred_check
            _
          $region42: #{tpu_custom_call.1} parent=39 // pred_check_branch
            %217 = sbr.rel (0) target = $region44
          $region43: #{tpu_custom_call.1} parent=39 // pred_region
            // Predicated region
            $region45: #{tpu_custom_call.1} parent=43 // pred_check
              _
            $region46: #{tpu_custom_call.1} parent=43 // pred_check_branch
              %219 = sbr.rel (0) target = $region48
            $region47: #{tpu_custom_call.1} parent=43 // pred_region
              // Predicated region
              $region60: #{tpu_custom_call.1} parent=47 // pred_check
                _
              $region61: #{tpu_custom_call.1} parent=47 // pred_check_branch
                %240 = sbr.rel (0) target = $region63
              $region62: #{tpu_custom_call.1} parent=47 // pred_region
                loop: start=0, step=1, limit=1
                $region64: #{tpu_custom_call.1} parent=62 // loop_pre_header
                  _
                $region65: #{tpu_custom_call.1} parent=62 // loop_header
                  %s242 = sphi 0, %s246
                  %p243 = scmp.ge.s32.totalorder %s242, 1
                  %s247 = sphi %s215, %s215
                  %s248 = sphi %s213, %s213
                $region66: #{tpu_custom_call.1} parent=62 // loop_header_branch
                  %245 = sbr.rel (%p243) target = $region70
                $region67: #{tpu_custom_call.1} parent=62 // loop_body
                  %v249 = vld [vmem:[%s247] sm:$0xff]
                  %250 = vst [vmem:[%s248] sm:$0xff] %v249
                  %v251 = vld [vmem:[%s247 + $0x10] sm:$0xff]
                  %252 = vst [vmem:[%s248 + $0x8] sm:$0xff] %v251
                  %v253 = vld [vmem:[%s247 + $0x20] sm:$0xff]
                  %254 = vst [vmem:[%s248 + $0x10] sm:$0xff] %v253
                  %v255 = vld [vmem:[%s247 + $0x30] sm:$0xff]
                  %256 = vst [vmem:[%s248 + $0x18] sm:$0xff] %v255
                $region68: #{tpu_custom_call.1} parent=62 // loop_footer
                  %s246 = sadd.s32 1, %s242
                $region69: #{tpu_custom_call.1} parent=62 // loop_footer_branch
                  %241 = sbr.rel target = $region65
                $region70: #{tpu_custom_call.1} parent=62 // loop_exit
                  _
              $region63: #{tpu_custom_call.1} parent=47 // pred_fallthru
                _
              // Predicated region
              $region71: #{tpu_custom_call.1} parent=47 // pred_check
                _
              $region72: #{tpu_custom_call.1} parent=47 // pred_check_branch
                %258 = sbr.rel target = $region74
              $region73: #{tpu_custom_call.1} parent=47 // pred_region
                _
              $region74: #{tpu_custom_call.1} parent=47 // pred_fallthru
                _
            $region48: #{tpu_custom_call.1} parent=43 // pred_fallthru
              _
            // Predicated region
            $region49: #{tpu_custom_call.1} parent=43 // pred_check
              _
            $region50: #{tpu_custom_call.1} parent=43 // pred_check_branch
              %221 = sbr.rel target = $region52
            $region51: #{tpu_custom_call.1} parent=43 // pred_region
              loop: start=0, step=1, limit=1
              $region53: #{tpu_custom_call.1} parent=51 // loop_pre_header
                _
              $region54: #{tpu_custom_call.1} parent=51 // loop_header
                %s224 = sphi 0, %s228
                %p225 = scmp.ge.s32.totalorder %s224, 1
                %s229 = sphi %s215, %s215
                %s230 = sphi %s213, %s213
              $region55: #{tpu_custom_call.1} parent=51 // loop_header_branch
                %227 = sbr.rel (%p225) target = $region59
              $region56: #{tpu_custom_call.1} parent=51 // loop_body
                %v231 = vld [vmem:[%s229] sm:$0xff]
                %232 = vst [vmem:[%s230] sm:$0xff] %v231
                %v233 = vld [vmem:[%s229 + $0x10] sm:$0xff]
                %234 = vst [vmem:[%s230 + $0x8] sm:$0xff] %v233
                %v235 = vld [vmem:[%s229 + $0x20] sm:$0xff]
                %236 = vst [vmem:[%s230 + $0x10] sm:$0xff] %v235
                %v237 = vld [vmem:[%s229 + $0x30] sm:$0xff]
                %238 = vst [vmem:[%s230 + $0x18] sm:$0xff] %v237
              $region57: #{tpu_custom_call.1} parent=51 // loop_footer
                %s228 = sadd.s32 1, %s224
              $region58: #{tpu_custom_call.1} parent=51 // loop_footer_branch
                %223 = sbr.rel target = $region54
              $region59: #{tpu_custom_call.1} parent=51 // loop_exit
                _
            $region52: #{tpu_custom_call.1} parent=43 // pred_fallthru
              _
          $region44: #{tpu_custom_call.1} parent=39 // pred_fallthru
            _
          %259 = vnop
        $region40: #{tpu_custom_call.1} parent=35 // pred_fallthru
          _
      $region36: #{tpu_custom_call.1} parent=5 // pred_fallthru
        _
      %p260 = scmp.le.s32.totalorder 1, %s16
      %p261 = scmp.lt.s32.totalorder %s16, 3
      %p262 = pnand %p260, %p261
      %p263 = pneg %p262
      // Predicated region
      $region75: #{tpu_custom_call.1} parent=5 // pred_check
        _
      $region76: #{tpu_custom_call.1} parent=5 // pred_check_branch
        %265 = sbr.rel (%p262) target = $region78
      $region77: #{tpu_custom_call.1} parent=5 // pred_region
        %s266 = ssub.s32 %s16, 1
        %s267 = sand.u32 %s29, 1
        %s268 = sand.u32 %s29, 1
        %s269 = smul.addr %s268, 32
        %s270 = scalar_lea.vmem [#allocation3], %s269
        // Predicated region
        $region79: #{tpu_custom_call.1} parent=77 // pred_check
          %p271 = pneg %p42
        $region80: #{tpu_custom_call.1} parent=77 // pred_check_branch
          %273 = sbr.rel (%p271) target = $region82
        $region81: #{tpu_custom_call.1} parent=77 // pred_region
          _
        $region82: #{tpu_custom_call.1} parent=77 // pred_fallthru
          _
        %s274 = sand.u32 %s29, 1
        %s275 = sand.u32 %s29, 1
        %s276 = smul.addr %s275, 32
        %s277 = scalar_lea.vmem [#allocation3], %s276
        %p278 = pneg %p42
        %p279 = pneg %p39
        %p280 = pneg %p63
        %p281 = pneg %p60
        %p282 = pneg %p84
        %p283 = pneg %p81
        %p284 = pneg %p105
        %p285 = pneg %p102
        %p286 = pneg %p126
        %p287 = pneg %p123
        %p288 = pneg %p147
        %p289 = pneg %p144
        %p290 = pneg %p173
        %p291 = pneg %p170
        %s292 = sand.u32 %s160, 1
        %s293 = scalar_lea.sflag [#allocation5], %s292
        %s294 = sand.u32 %s160, 1
        %s295 = scalar_lea.vmem [#allocation4], %s294
        %v297 = vld [vmem:[%s270] sm:$0xff]
        %v298 = vld [vmem:[%s270 + $0x8] sm:$0xff]
        %v299 = vld [vmem:[%s270 + $0x10] sm:$0xff]
        %v300 = vld [vmem:[%s270 + $0x18] sm:$0xff]
        %v301 = vld [vmem:[%s1] sm:$0xf]
        %v302 = vld [vmem:[%s1 + $0x4] sm:$0xf]
        %v303 = vpack.c.bf16 %v298, %v297
        %v304 = vpack.c.bf16 %v300, %v299
        %v307 = vunpack.c.l.b16 %v301
        %v308 = vunpack.c.l.b16 %v302
        %v309 = vpack.c.b16 %v308, %v307
        %vm310 = vcmask 261120
        %v312 = vsel %vm310, %v309, 0
        %314 = vmatprep.subr.bf16.mxu0 0
        %315 = vmatpush1.bf16.msra.mxu0 %v303
        %316 = vmatprep.subr.bf16.mxu0 0
        %317 = vmatpush1.bf16.msra.mxu0 %v304
        %318 = vmatprep.subr.bf16.mxu0 0
        %319 = vmatpush1.bf16.msra.mxu0 0
        %320 = vmatprep.subr.bf16.mxu0 0
        %321 = vmatpush1.bf16.msra.mxu0 0
        %322 = vmatprep.subr.bf16.mxu0 0
        %323 = vmatpush1.bf16.msra.mxu0 0
        %324 = vmatprep.subr.bf16.mxu0 0
        %325 = vmatpush1.bf16.msra.mxu0 0
        %326 = vmatprep.subr.bf16.mxu0 0
        %327 = vmatpush1.bf16.msra.mxu0 0
        %328 = vmatprep.subr.bf16.mxu0 0
        %329 = vmatpush1.bf16.msra.mxu0 0
        %330 = vmatprep.subr.bf16.mxu0 0
        %331 = vmatpush1.bf16.msra.mxu0 0
        %332 = vmatprep.subr.bf16.mxu0 0
        %333 = vmatpush1.bf16.msra.mxu0 0
        %334 = vmatprep.subr.bf16.mxu0 0
        %335 = vmatpush1.bf16.msra.mxu0 0
        %336 = vmatprep.subr.bf16.mxu0 0
        %337 = vmatpush1.bf16.msra.mxu0 0
        %338 = vmatprep.subr.bf16.mxu0 0
        %339 = vmatpush1.bf16.msra.mxu0 0
        %340 = vmatprep.subr.bf16.mxu0 0
        %341 = vmatpush1.bf16.msra.mxu0 0
        %342 = vmatprep.subr.bf16.mxu0 0
        %343 = vmatpush1.bf16.msra.mxu0 0
        %344 = vmatprep.subr.bf16.mxu0 0
        %345 = vmatpush1.bf16.msra.mxu0 0
        %346 = vmatprep.mubr.bf16.mxu0 0
        %347 = vmatmul.mubr.bf16.gmra.mrb[0].mxu0 %v312
        %v348 = vpop.f32.mrb[0].mxu0
        %v349 = vadd.f32 0.0, %v348
        %v350 = vpop.f32.mrb[0].mxu0
        %v351 = vpop.f32.mrb[0].mxu0
        %v352 = vadd.f32 0.0, %v351
        %v353 = vpop.f32.mrb[0].mxu0
        %354 = vdwg.mxu0
        %v355 = vadd.f32 %v349, %v352
        %v356 = vrot.slane %v355, 4
        %v357 = vadd.f32 %v355, %v356
        %v358 = vrot.slane %v357, 2
        %v359 = vadd.f32 %v357, %v358
        %v360 = vrot.slane %v359, 1
        %v361 = vadd.f32 %v359, %v360
        %v362 = vmul.f32 %v361, 0.0625
        %v363 = vsub.f32 %v349, %v362
        %v364 = vsub.f32 %v352, %v362
        %v365 = vmul.f32 %v363, %v363
        %v366 = vmul.f32 %v364, %v364
        %v367 = vadd.f32 %v365, %v366
        %v368 = vrot.slane %v367, 4
        %v369 = vadd.f32 %v367, %v368
        %v370 = vrot.slane %v369, 2
        %v371 = vadd.f32 %v369, %v370
        %v372 = vrot.slane %v371, 1
        %v373 = vadd.f32 %v371, %v372
        %v374 = vmul.f32 %v373, 0.0625
        %v375 = vadd.f32 %v374, 1e-05
        %v376 = vrsqrt.pop %v375
        %v377 = vmul.f32 %v363, %v376
        %v378 = vmul.f32 %v364, %v376
        %v379 = vld [vmem:[%s3] sm:$0xff]
        %v380 = vld [vmem:[%s3 + $0x8] sm:$0xff]
        %382 = vset.pattern.permute.xlu0 0
        %383 = vperm.xlu0 %382, %v379
        %v384 = vpop.permute.xlu0 %383
        %387 = vset.pattern.permute.xlu0 0
        %388 = vperm.xlu0 %387, %v380
        %v389 = vpop.permute.xlu0 %388
        %v391 = vmul.f32 %v377, %v384
        %v392 = vmul.f32 %v378, %v389
        %v393 = vld [vmem:[%s3 + $0x10] sm:$0xff]
        %v394 = vld [vmem:[%s3 + $0x18] sm:$0xff]
        %396 = vset.pattern.permute.xlu0 0
        %397 = vperm.xlu0 %396, %v393
        %v398 = vpop.permute.xlu0 %397
        %401 = vset.pattern.permute.xlu0 0
        %402 = vperm.xlu0 %401, %v394
        %v403 = vpop.permute.xlu0 %402
        %v405 = vadd.f32 %v391, %v398
        %v406 = vadd.f32 %v392, %v403
        %v407 = vmax.f32 %v405, 0.0
        %v408 = vmax.f32 %v406, 0.0
        %v409 = vmul.f32 %v349, %v407
        %v410 = vmul.f32 %v352, %v408
        %v411 = vld [vmem:[%s2] sm:$0xff]
        %v412 = vld [vmem:[%s2 + $0x8] sm:$0xff]
        %v413 = vld [vmem:[%s2 + $0x10] sm:$0xff]
        %v414 = vld [vmem:[%s2 + $0x18] sm:$0xff]
        %416 = vset.pattern.permute.xlu0 0
        %417 = vperm.xlu0 %416, %v411
        %v418 = vpop.permute.xlu0 %417
        %421 = vset.pattern.permute.xlu0 0
        %422 = vperm.xlu0 %421, %v412
        %v423 = vpop.permute.xlu0 %422
        %426 = vset.pattern.permute.xlu0 0
        %427 = vperm.xlu0 %426, %v413
        %v428 = vpop.permute.xlu0 %427
        %431 = vset.pattern.permute.xlu0 0
        %432 = vperm.xlu0 %431, %v414
        %v433 = vpop.permute.xlu0 %432
        %v435 = vadd.f32 %v349, %v418
        %v436 = vadd.f32 %v352, %v423
        %v437 = vadd.f32 %v409, %v428
        %v438 = vadd.f32 %v410, %v433
        %v439 = vmul.f32 %v297, %v435
        %v440 = vmul.f32 %v298, %v436
        %v441 = vmul.f32 %v299, %v437
        %v442 = vmul.f32 %v300, %v438
        %v443 = vadd.f32 %v439, %v297
        %v444 = vadd.f32 %v440, %v298
        %v445 = vadd.f32 %v441, %v299
        %v446 = vadd.f32 %v442, %v300
        %s447 = scalar_lea.vmem %s1, 8
        %v448 = vld [vmem:[%s447] sm:$0xf]
        %v449 = vld [vmem:[%s447 + $0x4] sm:$0xf]
        %v450 = vpack.c.bf16 %v444, %v443
        %v451 = vpack.c.bf16 %v446, %v445
        %v454 = vunpack.c.l.b16 %v448
        %v455 = vunpack.c.l.b16 %v449
        %v456 = vpack.c.b16 %v455, %v454
        %v458 = vsel %vm310, %v456, 0
        %460 = vmatprep.subr.bf16.mxu0 0
        %461 = vmatpush1.bf16.msra.mxu0 %v450
        %462 = vmatprep.subr.bf16.mxu0 0
        %463 = vmatpush1.bf16.msra.mxu0 %v451
        %464 = vmatprep.subr.bf16.mxu0 0
        %465 = vmatpush1.bf16.msra.mxu0 0
        %466 = vmatprep.subr.bf16.mxu0 0
        %467 = vmatpush1.bf16.msra.mxu0 0
        %468 = vmatprep.subr.bf16.mxu0 0
        %469 = vmatpush1.bf16.msra.mxu0 0
        %470 = vmatprep.subr.bf16.mxu0 0
        %471 = vmatpush1.bf16.msra.mxu0 0
        %472 = vmatprep.subr.bf16.mxu0 0
        %473 = vmatpush1.bf16.msra.mxu0 0
        %474 = vmatprep.subr.bf16.mxu0 0
        %475 = vmatpush1.bf16.msra.mxu0 0
        %476 = vmatprep.subr.bf16.mxu0 0
        %477 = vmatpush1.bf16.msra.mxu0 0
        %478 = vmatprep.subr.bf16.mxu0 0
        %479 = vmatpush1.bf16.msra.mxu0 0
        %480 = vmatprep.subr.bf16.mxu0 0
        %481 = vmatpush1.bf16.msra.mxu0 0
        %482 = vmatprep.subr.bf16.mxu0 0
        %483 = vmatpush1.bf16.msra.mxu0 0
        %484 = vmatprep.subr.bf16.mxu0 0
        %485 = vmatpush1.bf16.msra.mxu0 0
        %486 = vmatprep.subr.bf16.mxu0 0
        %487 = vmatpush1.bf16.msra.mxu0 0
        %488 = vmatprep.subr.bf16.mxu0 0
        %489 = vmatpush1.bf16.msra.mxu0 0
        %490 = vmatprep.subr.bf16.mxu0 0
        %491 = vmatpush1.bf16.msra.mxu0 0
        %492 = vmatprep.mubr.bf16.mxu0 0
        %493 = vmatmul.mubr.bf16.gmra.mrb[0].mxu0 %v458
        %v494 = vpop.f32.mrb[0].mxu0
        %v495 = vadd.f32 0.0, %v494
        %v496 = vpop.f32.mrb[0].mxu0
        %v497 = vpop.f32.mrb[0].mxu0
        %v498 = vadd.f32 0.0, %v497
        %v499 = vpop.f32.mrb[0].mxu0
        %500 = vdwg.mxu0
        %v501 = vadd.f32 %v495, %v498
        %v502 = vrot.slane %v501, 4
        %v503 = vadd.f32 %v501, %v502
        %v504 = vrot.slane %v503, 2
        %v505 = vadd.f32 %v503, %v504
        %v506 = vrot.slane %v505, 1
        %v507 = vadd.f32 %v505, %v506
        %v508 = vmul.f32 %v507, 0.0625
        %v509 = vsub.f32 %v495, %v508
        %v510 = vsub.f32 %v498, %v508
        %v511 = vmul.f32 %v509, %v509
        %v512 = vmul.f32 %v510, %v510
        %v513 = vadd.f32 %v511, %v512
        %v514 = vrot.slane %v513, 4
        %v515 = vadd.f32 %v513, %v514
        %v516 = vrot.slane %v515, 2
        %v517 = vadd.f32 %v515, %v516
        %v518 = vrot.slane %v517, 1
        %v519 = vadd.f32 %v517, %v518
        %v520 = vmul.f32 %v519, 0.0625
        %v521 = vadd.f32 %v520, 1e-05
        %v522 = vrsqrt.pop %v521
        %v523 = vmul.f32 %v509, %v522
        %v524 = vmul.f32 %v510, %v522
        %s525 = scalar_lea.vmem %s3, 32
        %v526 = vld [vmem:[%s525] sm:$0xff]
        %v527 = vld [vmem:[%s525 + $0x8] sm:$0xff]
        %529 = vset.pattern.permute.xlu0 0
        %530 = vperm.xlu0 %529, %v526
        %v531 = vpop.permute.xlu0 %530
        %534 = vset.pattern.permute.xlu0 0
        %535 = vperm.xlu0 %534, %v527
        %v536 = vpop.permute.xlu0 %535
        %v538 = vmul.f32 %v523, %v531
        %v539 = vmul.f32 %v524, %v536
        %v540 = vld [vmem:[%s525 + $0x10] sm:$0xff]
        %v541 = vld [vmem:[%s525 + $0x18] sm:$0xff]
        %543 = vset.pattern.permute.xlu0 0
        %544 = vperm.xlu0 %543, %v540
        %v545 = vpop.permute.xlu0 %544
        %548 = vset.pattern.permute.xlu0 0
        %549 = vperm.xlu0 %548, %v541
        %v550 = vpop.permute.xlu0 %549
        %v552 = vadd.f32 %v538, %v545
        %v553 = vadd.f32 %v539, %v550
        %v554 = vmax.f32 %v552, 0.0
        %v555 = vmax.f32 %v553, 0.0
        %v556 = vmul.f32 %v495, %v554
        %v557 = vmul.f32 %v498, %v555
        %s558 = scalar_lea.vmem %s2, 32
        %v559 = vld [vmem:[%s558] sm:$0xff]
        %v560 = vld [vmem:[%s558 + $0x8] sm:$0xff]
        %v561 = vld [vmem:[%s558 + $0x10] sm:$0xff]
        %v562 = vld [vmem:[%s558 + $0x18] sm:$0xff]
        %564 = vset.pattern.permute.xlu0 0
        %565 = vperm.xlu0 %564, %v559
        %v566 = vpop.permute.xlu0 %565
        %569 = vset.pattern.permute.xlu0 0
        %570 = vperm.xlu0 %569, %v560
        %v571 = vpop.permute.xlu0 %570
        %574 = vset.pattern.permute.xlu0 0
        %575 = vperm.xlu0 %574, %v561
        %v576 = vpop.permute.xlu0 %575
        %579 = vset.pattern.permute.xlu0 0
        %580 = vperm.xlu0 %579, %v562
        %v581 = vpop.permute.xlu0 %580
        %v583 = vadd.f32 %v495, %v566
        %v584 = vadd.f32 %v498, %v571
        %v585 = vadd.f32 %v556, %v576
        %v586 = vadd.f32 %v557, %v581
        %v587 = vmul.f32 %v443, %v583
        %v588 = vmul.f32 %v444, %v584
        %v589 = vmul.f32 %v445, %v585
        %v590 = vmul.f32 %v446, %v586
        %v591 = vadd.f32 %v587, %v443
        %v592 = vadd.f32 %v588, %v444
        %v593 = vadd.f32 %v589, %v445
        %v594 = vadd.f32 %v590, %v446
        %s595 = scalar_lea.vmem %s1, 16
        %v596 = vld [vmem:[%s595] sm:$0xf]
        %v597 = vld [vmem:[%s595 + $0x4] sm:$0xf]
        %v598 = vpack.c.bf16 %v592, %v591
        %v599 = vpack.c.bf16 %v594, %v593
        %v602 = vunpack.c.l.b16 %v596
        %v603 = vunpack.c.l.b16 %v597
        %v604 = vpack.c.b16 %v603, %v602
        %v606 = vsel %vm310, %v604, 0
        %608 = vmatprep.subr.bf16.mxu0 0
        %609 = vmatpush1.bf16.msra.mxu0 %v598
        %610 = vmatprep.subr.bf16.mxu0 0
        %611 = vmatpush1.bf16.msra.mxu0 %v599
        %612 = vmatprep.subr.bf16.mxu0 0
        %613 = vmatpush1.bf16.msra.mxu0 0
        %614 = vmatprep.subr.bf16.mxu0 0
        %615 = vmatpush1.bf16.msra.mxu0 0
        %616 = vmatprep.subr.bf16.mxu0 0
        %617 = vmatpush1.bf16.msra.mxu0 0
        %618 = vmatprep.subr.bf16.mxu0 0
        %619 = vmatpush1.bf16.msra.mxu0 0
        %620 = vmatprep.subr.bf16.mxu0 0
        %621 = vmatpush1.bf16.msra.mxu0 0
        %622 = vmatprep.subr.bf16.mxu0 0
        %623 = vmatpush1.bf16.msra.mxu0 0
        %624 = vmatprep.subr.bf16.mxu0 0
        %625 = vmatpush1.bf16.msra.mxu0 0
        %626 = vmatprep.subr.bf16.mxu0 0
        %627 = vmatpush1.bf16.msra.mxu0 0
        %628 = vmatprep.subr.bf16.mxu0 0
        %629 = vmatpush1.bf16.msra.mxu0 0
        %630 = vmatprep.subr.bf16.mxu0 0
        %631 = vmatpush1.bf16.msra.mxu0 0
        %632 = vmatprep.subr.bf16.mxu0 0
        %633 = vmatpush1.bf16.msra.mxu0 0
        %634 = vmatprep.subr.bf16.mxu0 0
        %635 = vmatpush1.bf16.msra.mxu0 0
        %636 = vmatprep.subr.bf16.mxu0 0
        %637 = vmatpush1.bf16.msra.mxu0 0
        %638 = vmatprep.subr.bf16.mxu0 0
        %639 = vmatpush1.bf16.msra.mxu0 0
        %640 = vmatprep.mubr.bf16.mxu0 0
        %641 = vmatmul.mubr.bf16.gmra.mrb[0].mxu0 %v606
        %v642 = vpop.f32.mrb[0].mxu0
        %v643 = vadd.f32 0.0, %v642
        %v644 = vpop.f32.mrb[0].mxu0
        %v645 = vpop.f32.mrb[0].mxu0
        %v646 = vadd.f32 0.0, %v645
        %v647 = vpop.f32.mrb[0].mxu0
        %648 = vdwg.mxu0
        %v649 = vadd.f32 %v643, %v646
        %v650 = vrot.slane %v649, 4
        %v651 = vadd.f32 %v649, %v650
        %v652 = vrot.slane %v651, 2
        %v653 = vadd.f32 %v651, %v652
        %v654 = vrot.slane %v653, 1
        %v655 = vadd.f32 %v653, %v654
        %v656 = vmul.f32 %v655, 0.0625
        %v657 = vsub.f32 %v643, %v656
        %v658 = vsub.f32 %v646, %v656
        %v659 = vmul.f32 %v657, %v657
        %v660 = vmul.f32 %v658, %v658
        %v661 = vadd.f32 %v659, %v660
        %v662 = vrot.slane %v661, 4
        %v663 = vadd.f32 %v661, %v662
        %v664 = vrot.slane %v663, 2
        %v665 = vadd.f32 %v663, %v664
        %v666 = vrot.slane %v665, 1
        %v667 = vadd.f32 %v665, %v666
        %v668 = vmul.f32 %v667, 0.0625
        %v669 = vadd.f32 %v668, 1e-05
        %v670 = vrsqrt.pop %v669
        %v671 = vmul.f32 %v657, %v670
        %v672 = vmul.f32 %v658, %v670
        %s673 = scalar_lea.vmem %s3, 64
        %v674 = vld [vmem:[%s673] sm:$0xff]
        %v675 = vld [vmem:[%s673 + $0x8] sm:$0xff]
        %677 = vset.pattern.permute.xlu0 0
        %678 = vperm.xlu0 %677, %v674
        %v679 = vpop.permute.xlu0 %678
        %682 = vset.pattern.permute.xlu0 0
        %683 = vperm.xlu0 %682, %v675
        %v684 = vpop.permute.xlu0 %683
        %v686 = vmul.f32 %v671, %v679
        %v687 = vmul.f32 %v672, %v684
        %v688 = vld [vmem:[%s673 + $0x10] sm:$0xff]
        %v689 = vld [vmem:[%s673 + $0x18] sm:$0xff]
        %691 = vset.pattern.permute.xlu0 0
        %692 = vperm.xlu0 %691, %v688
        %v693 = vpop.permute.xlu0 %692
        %696 = vset.pattern.permute.xlu0 0
        %697 = vperm.xlu0 %696, %v689
        %v698 = vpop.permute.xlu0 %697
        %v700 = vadd.f32 %v686, %v693
        %v701 = vadd.f32 %v687, %v698
        %v702 = vmax.f32 %v700, 0.0
        %v703 = vmax.f32 %v701, 0.0
        %v704 = vmul.f32 %v643, %v702
        %v705 = vmul.f32 %v646, %v703
        %s706 = scalar_lea.vmem %s2, 64
        %v707 = vld [vmem:[%s706] sm:$0xff]
        %v708 = vld [vmem:[%s706 + $0x8] sm:$0xff]
        %v709 = vld [vmem:[%s706 + $0x10] sm:$0xff]
        %v710 = vld [vmem:[%s706 + $0x18] sm:$0xff]
        %712 = vset.pattern.permute.xlu0 0
        %713 = vperm.xlu0 %712, %v707
        %v714 = vpop.permute.xlu0 %713
        %717 = vset.pattern.permute.xlu0 0
        %718 = vperm.xlu0 %717, %v708
        %v719 = vpop.permute.xlu0 %718
        %722 = vset.pattern.permute.xlu0 0
        %723 = vperm.xlu0 %722, %v709
        %v724 = vpop.permute.xlu0 %723
        %727 = vset.pattern.permute.xlu0 0
        %728 = vperm.xlu0 %727, %v710
        %v729 = vpop.permute.xlu0 %728
        %v731 = vadd.f32 %v643, %v714
        %v732 = vadd.f32 %v646, %v719
        %v733 = vadd.f32 %v704, %v724
        %v734 = vadd.f32 %v705, %v729
        %v735 = vmul.f32 %v591, %v731
        %v736 = vmul.f32 %v592, %v732
        %v737 = vmul.f32 %v593, %v733
        %v738 = vmul.f32 %v594, %v734
        %v739 = vadd.f32 %v735, %v591
        %v740 = vadd.f32 %v736, %v592
        %v741 = vadd.f32 %v737, %v593
        %v742 = vadd.f32 %v738, %v594
        %v743 = vld [vmem:[%s4] sm:$0xff]
        %v744 = vld [vmem:[%s4 + $0x8] sm:$0xff]
        %v745 = vld [vmem:[%s4 + $0x10] sm:$0xff]
        %v746 = vld [vmem:[%s4 + $0x18] sm:$0xff]
        %748 = vset.pattern.permute.xlu0 0
        %749 = vperm.xlu0 %748, %v743
        %v750 = vpop.permute.xlu0 %749
        %753 = vset.pattern.permute.xlu0 0
        %754 = vperm.xlu0 %753, %v744
        %v755 = vpop.permute.xlu0 %754
        %758 = vset.pattern.permute.xlu0 0
        %759 = vperm.xlu0 %758, %v745
        %v760 = vpop.permute.xlu0 %759
        %763 = vset.pattern.permute.xlu0 0
        %764 = vperm.xlu0 %763, %v746
        %v765 = vpop.permute.xlu0 %764
        %v767 = vmul.f32 %v750, %v739
        %v768 = vmul.f32 %v755, %v740
        %v769 = vmul.f32 %v760, %v741
        %v770 = vmul.f32 %v765, %v742
        %v771 = vadd.f32 %v767, %v768
        %v772 = vadd.f32 %v771, %v769
        %v773 = vadd.f32 %v772, %v770
        %v774 = vrot.slane %v773, 4
        %v775 = vadd.f32 %v773, %v774
        %v776 = vrot.slane %v775, 2
        %v777 = vadd.f32 %v775, %v776
        %v778 = vrot.slane %v777, 1
        %v779 = vadd.f32 %v777, %v778
        %s780 = sld [smem:[#allocation2]]
        %v781 = vstv %s780
        %v782 = vadd.f32 %v779, %v781
        %783 = vst [vmem:[%s295] sm:$0x1] %v782
        %s784 = sand.u32 %s160, 1
        %s785 = scalar_lea.sflag [#allocation5], %s784
        %s786 = sand.u32 %s160, 1
        %s787 = scalar_lea.vmem [#allocation4], %s786
        // Predicated region
        $region83: #{tpu_custom_call.1} parent=77 // pred_check
          %p788 = pneg %p170
        $region84: #{tpu_custom_call.1} parent=77 // pred_check_branch
          %790 = sbr.rel (%p788) target = $region86
        $region85: #{tpu_custom_call.1} parent=77 // pred_region
          %s792 = ssub.s32 16, 16
          %793 = vsyncadd %s785, %s792
          %s794 = smul.addr %s21, 16
          %s795 = scalar_lea.hbm %s6, %s794
          %s797 = sshll.u32 %s787, 4
          %s798 = int_to_ptr.vmem [resolvable:$true] %s797
          %800 = dma.vmem_to_hbm [thread:$0]  %s798, 16, %s795, %s785
        $region86: #{tpu_custom_call.1} parent=77 // pred_fallthru
          _
      $region78: #{tpu_custom_call.1} parent=5 // pred_fallthru
        _
      %p801 = scmp.le.s32.totalorder 2, %s16
      // Predicated region
      $region87: #{tpu_custom_call.1} parent=5 // pred_check
        %p802 = pneg %p801
      $region88: #{tpu_custom_call.1} parent=5 // pred_check_branch
        %804 = sbr.rel (%p802) target = $region90
      $region89: #{tpu_custom_call.1} parent=5 // pred_region
        %s805 = ssub.s32 %s16, 2
        // Predicated region
        $region91: #{tpu_custom_call.1} parent=89 // pred_check
          %p806 = pneg %p176
        $region92: #{tpu_custom_call.1} parent=89 // pred_check_branch
          %808 = sbr.rel (%p806) target = $region94
        $region93: #{tpu_custom_call.1} parent=89 // pred_region
          %s809 = sand.u32 %s161, 1
          %s810 = scalar_lea.sflag [#allocation5], %s809
          %s811 = sand.u32 %s161, 1
          %s812 = scalar_lea.vmem [#allocation4], %s811
          %813 = dma.done %s810, 16
        $region94: #{tpu_custom_call.1} parent=89 // pred_fallthru
          _
      $region90: #{tpu_custom_call.1} parent=5 // pred_fallthru
        _
    $region6: #{tpu_custom_call.1} parent=1 // loop_footer
      %s20 = sadd.s32 1, %s16
    $region7: #{tpu_custom_call.1} parent=1 // loop_footer_branch
      %15 = sbr.rel target = $region3
    $region8: #{tpu_custom_call.1} parent=1 // loop_exit
      _
    %814 = vsyncpa [#allocation5], 1
    %s815 = scalar_lea.sflag [#allocation5], 1
    %816 = vsyncpa %s815, 1

</llo_original>
